<compile_context>
chip_gen: v6e
topology: v6e:2x2x1
jax: 0.10.0
libtpu: 0.0.40
codegen_flags: <defaults>
</compile_context>

<pallas_src>
import jax
import jax.numpy as jnp
from jax.experimental import pallas as pl
from jax.experimental.pallas import tpu as pltpu

_LANE = 128  # TPU vreg lane width
_VMEM_LIMIT = 32 * 1024 * 1024


def _round_up(n: int, m: int) -> int:
    return ((n + m - 1) // m) * m


def _pick_tile(B: int, tile_b: int) -> int:
    # Lane-aligned tile, capped at the (lane-rounded) batch size.  On v7x,
    # sweep tile_b up to 16384 and keep >=2 grid steps when B allows so both
    # TensorCores get work under dimension_semantics=("parallel",).
    return min(_round_up(max(tile_b, _LANE), _LANE), _round_up(max(B, 1), _LANE))


def _cost(B: int, F_in: int, F_out: int, x_dtype, w_dtype, out_dtype):
    xb = jnp.dtype(x_dtype).itemsize
    wb = jnp.dtype(w_dtype).itemsize
    ob = jnp.dtype(out_dtype).itemsize
    return pl.CostEstimate(
        flops=2 * B * F_in * F_out,
        transcendentals=0,
        bytes_accessed=B * F_in * xb + F_in * F_out * wb + F_out * 4 + B * F_out * ob,
    )


# ----------------------------------------------------------------------------
# Row-major primary path: y[(B, F_out)] = x[(B, F_in)] @ W[(F_in, F_out)] + b
# ----------------------------------------------------------------------------
def _grappa_kernel_rm(x_ref, w_ref, b_ref, o_ref):
    # x_ref : (TB, F_in)    batch tile of x (contiguous HBM slice)
    # w_ref : (F_in, F_out) full W, VMEM-resident across the grid
    # b_ref : (1, F_out)    bias row, VMEM-resident across the grid
    # o_ref : (TB, F_out)   batch tile of y
    acc = jnp.dot(x_ref[...], w_ref[...], preferred_element_type=jnp.float32)
    o_ref[...] = (acc + b_ref[...]).astype(o_ref.dtype)


def grappa_interpolate(x: jax.Array, w: jax.Array, b: jax.Array,
                       *, tile_b: int = 8192, out_dtype=None) -> jax.Array:
    """y = x @ w + b on the natural (B, F) layout. No transposes, pads or slices."""
    B, F_in = x.shape
    F_in_w, F_out = w.shape
    assert F_in == F_in_w, "weight/input feature mismatch"
    out_dtype = out_dtype if out_dtype is not None else x.dtype

    tile = _pick_tile(B, tile_b)
    grid = (pl.cdiv(B, tile),)
    b_row = b.reshape(1, F_out).astype(jnp.float32)

    return pl.pallas_call(
        _grappa_kernel_rm,
        out_shape=jax.ShapeDtypeStruct((B, F_out), out_dtype),
        grid_spec=pltpu.PrefetchScalarGridSpec(
            num_scalar_prefetch=0,
            grid=grid,
            in_specs=[
                pl.BlockSpec((tile, F_in), lambda i: (i, 0)),
                # Resident full-array blocks; do NOT pad to (8,128) -- legality
                # comes from "block equals full array dims".
                pl.BlockSpec((F_in, F_out), lambda i: (0, 0)),
                pl.BlockSpec((1, F_out), lambda i: (0, 0)),
            ],
            out_specs=pl.BlockSpec((tile, F_out), lambda i: (i, 0)),
        ),
        compiler_params=pltpu.CompilerParams(
            dimension_semantics=("parallel",),
            vmem_limit_bytes=_VMEM_LIMIT,
        ),
        cost_estimate=_cost(B, F_in, F_out, x.dtype, w.dtype, out_dtype),
    )(x, w, b_row)


# ----------------------------------------------------------------------------
# Lane-dense transposed path for callers already holding (F_in, B) data:
# y^T[(F_out, B)] = W^T[(F_out, F_in)] @ x^T[(F_in, B)] + b
# ----------------------------------------------------------------------------
def _grappa_kernel_t(x_ref, w_ref, b_ref, o_ref):
    # x_ref : (F_in, TB)    lane-dense batch tile of x^T
    # w_ref : (F_out, F_in) full W^T, VMEM-resident
    # b_ref : (F_out, 1)    bias column, VMEM-resident
    # o_ref : (F_out, TB)   lane-dense output tile of y^T
    acc = jnp.dot(w_ref[...], x_ref[...], preferred_element_type=jnp.float32)
    o_ref[...] = (acc + b_ref[...]).astype(o_ref.dtype)


def grappa_interpolate_t(x_t: jax.Array, w_t: jax.Array, b: jax.Array,
                         *, tile_b: int = 8192, out_dtype=None) -> jax.Array:
    """Transposed-layout GRAPPA interpolation: returns y^T = W^T @ x^T + b."""
    F_in, B = x_t.shape
    F_out, F_in_w = w_t.shape
    assert F_in == F_in_w, "weight/input feature mismatch"
    out_dtype = out_dtype if out_dtype is not None else x_t.dtype

    tile = _pick_tile(B, tile_b)
    grid = (pl.cdiv(B, tile),)
    b_col = b.reshape(F_out, 1).astype(jnp.float32)

    return pl.pallas_call(
        _grappa_kernel_t,
        out_shape=jax.ShapeDtypeStruct((F_out, B), out_dtype),
        grid_spec=pltpu.PrefetchScalarGridSpec(
            num_scalar_prefetch=0,
            grid=grid,
            in_specs=[
                pl.BlockSpec((F_in, tile), lambda i: (0, i)),
                pl.BlockSpec((F_out, F_in), lambda i: (0, 0)),   # resident W^T
                pl.BlockSpec((F_out, 1), lambda i: (0, 0)),      # resident bias
            ],
            out_specs=pl.BlockSpec((F_out, tile), lambda i: (0, i)),
        ),
        compiler_params=pltpu.CompilerParams(
            dimension_semantics=("parallel",),
            vmem_limit_bytes=_VMEM_LIMIT,
        ),
        cost_estimate=_cost(B, F_in, F_out, x_t.dtype, w_t.dtype, out_dtype),
    )(x_t, w_t, b_col)


if __name__ == "__main__":
    # GRAPPA-consistent shapes: n_coils=4, n_neighbors=8
    #   F_in = 4*8*2 = 64, F_out = 4*2 = 8
    F_in, F_out = 64, 8
    key = jax.random.PRNGKey(0)
    kx, kw, kb, kx2 = jax.random.split(key, 4)

    w = jax.random.normal(kw, (F_in, F_out), dtype=jnp.float32) * 0.05
    b = jax.random.normal(kb, (F_out,), dtype=jnp.float32) * 0.01

    # --- lane-aligned batch ------------------------------------------------
    B1 = 256
    x1 = jax.random.normal(kx, (B1, F_in), dtype=jnp.float32)
    y1 = jax.block_until_ready(grappa_interpolate(x1, w, b))
    ref1 = x1 @ w + b[None, :]
    assert y1.shape == (B1, F_out)
    assert jnp.allclose(y1, ref1, atol=1e-4, rtol=1e-4)

    # --- ragged batch (exercises the masked boundary block, no pad/slice) --
    B2 = 200
    x2 = jax.random.normal(kx2, (B2, F_in), dtype=jnp.float32)
    y2 = jax.block_until_ready(grappa_interpolate(x2, w, b))
    ref2 = x2 @ w + b[None, :]
    assert y2.shape == (B2, F_out)
    assert jnp.allclose(y2, ref2, atol=1e-4, rtol=1e-4)

    # --- transposed lane-dense path for layout-aware callers ----------------
    y2t = jax.block_until_ready(grappa_interpolate_t(x2.T, w.T, b))
    assert y2t.shape == (F_out, B2)
    assert jnp.allclose(y2t, ref2.T, atol=1e-4, rtol=1e-4)

    print("KERNEL_OK")
</pallas_src>

<mosaic_0001>
module attributes {stable_mosaic.version = 11 : i64} {
  func.func @_grappa_kernel_rm(%arg0: i32, %arg1: memref<256x64xf32, #tpu.memory_space<vmem>>, %arg2: memref<64x8xf32, #tpu.memory_space<vmem>>, %arg3: memref<1x8xf32, #tpu.memory_space<vmem>>, %arg4: memref<256x8xf32, #tpu.memory_space<vmem>>) attributes {dimension_semantics = [#tpu.dimension_semantics<parallel>], iteration_bounds = array<i64: 1>, scalar_prefetch = 0 : i64, scratch_operands = 0 : i64, tpu.core_type = #tpu.core_type<tc>, window_params = [{transform_indices = @transform_0, window_bounds = array<i64: 256, 64>}, {pipeline_mode = #tpu.pipeline_mode<synchronous>, transform_indices = @transform_1, window_bounds = array<i64: 64, 8>}, {pipeline_mode = #tpu.pipeline_mode<synchronous>, transform_indices = @transform_2, window_bounds = array<i64: 1, 8>}, {transform_indices = @transform_3, window_bounds = array<i64: 256, 8>}]} {
    %c0 = arith.constant 0 : index
    %c0_0 = arith.constant 0 : index
    %0 = vector.load %arg1[%c0, %c0_0] : memref<256x64xf32, #tpu.memory_space<vmem>>, vector<256x64xf32>
    %c0_1 = arith.constant 0 : index
    %c0_2 = arith.constant 0 : index
    %1 = vector.load %arg2[%c0_1, %c0_2] : memref<64x8xf32, #tpu.memory_space<vmem>>, vector<64x8xf32>
    %cst = arith.constant dense<0.000000e+00> : vector<256x8xf32>
    %2 = tpu.matmul %0, %1, %cst {dimension_numbers = #tpu.dot_dimension_numbers<[1], [0], [0], [1], [0, 0, 1, 1], [], []>} : vector<256x64xf32>, vector<64x8xf32>, vector<256x8xf32> -> vector<256x8xf32>
    %c0_3 = arith.constant 0 : index
    %c0_4 = arith.constant 0 : index
    %3 = vector.load %arg3[%c0_3, %c0_4] : memref<1x8xf32, #tpu.memory_space<vmem>>, vector<1x8xf32>
    %4 = vector.broadcast %3 : vector<1x8xf32> to vector<256x8xf32>
    %5 = arith.addf %2, %4 : vector<256x8xf32>
    %c0_5 = arith.constant 0 : index
    %c0_6 = arith.constant 0 : index
    %6 = vector.load %arg4[%c0_5, %c0_6] : memref<256x8xf32, #tpu.memory_space<vmem>>, vector<256x8xf32>
    tpu.vector_store %arg4[%c0_5, %c0_6], %5 {strides = array<i32>} : memref<256x8xf32, #tpu.memory_space<vmem>>, vector<256x8xf32>,
    return
  }
  func.func @transform_0(%arg0: i32) -> (i32, i32) {
    %c0_i32 = arith.constant 0 : i32
    %c0_i32_0 = arith.constant 0 : i32
    return %arg0, %c0_i32 : i32, i32
  }
  func.func @transform_1(%arg0: i32) -> (i32, i32) {
    %c0_i32 = arith.constant 0 : i32
    %c0_i32_0 = arith.constant 0 : i32
    %c0_i32_1 = arith.constant 0 : i32
    return %c0_i32, %c0_i32_0 : i32, i32
  }
  func.func @transform_2(%arg0: i32) -> (i32, i32) {
    %c0_i32 = arith.constant 0 : i32
    %c0_i32_0 = arith.constant 0 : i32
    %c0_i32_1 = arith.constant 0 : i32
    return %c0_i32, %c0_i32_0 : i32, i32
  }
  func.func @transform_3(%arg0: i32) -> (i32, i32) {
    %c0_i32 = arith.constant 0 : i32
    %c0_i32_0 = arith.constant 0 : i32
    return %arg0, %c0_i32 : i32, i32
  }
}

</mosaic_0001>

<llo_original>
// kernel: tpu_custom_call.1
$region0: #{tpu_custom_call.1}
  #allocation0 [shape = 'u32[]', space=smem, size = 0x4, offset = 0x4, fixed_abs, tag = 'smem constant byte address 0x4 - core index']
  #allocation1 [shape = 'u32[144,128]{1,0:T(1,128)}', space=vmem, size = 0x12000, scoped, tag = 'internal scratch']
  %s0 = inlined_call_operand.vmem [shape: f32[256,64], index: 0, kind: input, shape index: {}]
  %s1 = inlined_call_operand.vmem [shape: f32[64,8], index: 1, kind: input, shape index: {}]
  %s2 = inlined_call_operand.vmem [shape: f32[1,8], index: 2, kind: input, shape index: {}]
  %s3 = inlined_call_operand.vmem [shape: f32[256,8], index: 3, kind: output, shape index: {}]
  %s4 = sld [smem:[#allocation0]]
  $region22: #{tpu_custom_call.1} parent=0
    _
  %s6 = ssub.s32 1, %s4
  %s7 = scalar_select 0, %s6, %s4
  // Predicated region
  $region2: #{tpu_custom_call.1} parent=0 // pred_check
    _
  $region3: #{tpu_custom_call.1} parent=0 // pred_check_branch
    %9 = sbr.rel (0) target = $region5
  $region4: #{tpu_custom_call.1} parent=0 // pred_region
    _
  $region5: #{tpu_custom_call.1} parent=0 // pred_fallthru
    _
  // Predicated region
  $region6: #{tpu_custom_call.1} parent=0 // pred_check
    _
  $region7: #{tpu_custom_call.1} parent=0 // pred_check_branch
    %11 = sbr.rel (0) target = $region9
  $region8: #{tpu_custom_call.1} parent=0 // pred_region
    _
  $region9: #{tpu_custom_call.1} parent=0 // pred_fallthru
    _
  // Predicated region
  $region10: #{tpu_custom_call.1} parent=0 // pred_check
    _
  $region11: #{tpu_custom_call.1} parent=0 // pred_check_branch
    %13 = sbr.rel (0) target = $region13
  $region12: #{tpu_custom_call.1} parent=0 // pred_region
    _
  $region13: #{tpu_custom_call.1} parent=0 // pred_fallthru
    _
  %v14 = vld [vmem:[%s0] sm:$0xff]
  %v15 = vld [vmem:[%s0 + $0x8] sm:$0xff]
  %v16 = vld [vmem:[%s0 + $0x10] sm:$0xff]
  %v17 = vld [vmem:[%s0 + $0x18] sm:$0xff]
  %v18 = vld [vmem:[%s0 + $0x20] sm:$0xff]
  %v19 = vld [vmem:[%s0 + $0x28] sm:$0xff]
  %v20 = vld [vmem:[%s0 + $0x30] sm:$0xff]
  %v21 = vld [vmem:[%s0 + $0x38] sm:$0xff]
  %v22 = vld [vmem:[%s0 + $0x40] sm:$0xff]
  %v23 = vld [vmem:[%s0 + $0x48] sm:$0xff]
  %v24 = vld [vmem:[%s0 + $0x50] sm:$0xff]
  %v25 = vld [vmem:[%s0 + $0x58] sm:$0xff]
  %v26 = vld [vmem:[%s0 + $0x60] sm:$0xff]
  %v27 = vld [vmem:[%s0 + $0x68] sm:$0xff]
  %v28 = vld [vmem:[%s0 + $0x70] sm:$0xff]
  %v29 = vld [vmem:[%s0 + $0x78] sm:$0xff]
  %v30 = vld [vmem:[%s0 + $0x80] sm:$0xff]
  %v31 = vld [vmem:[%s0 + $0x88] sm:$0xff]
  %v32 = vld [vmem:[%s0 + $0x90] sm:$0xff]
  %v33 = vld [vmem:[%s0 + $0x98] sm:$0xff]
  %v34 = vld [vmem:[%s0 + $0xa0] sm:$0xff]
  %v35 = vld [vmem:[%s0 + $0xa8] sm:$0xff]
  %v36 = vld [vmem:[%s0 + $0xb0] sm:$0xff]
  %v37 = vld [vmem:[%s0 + $0xb8] sm:$0xff]
  %v38 = vld [vmem:[%s0 + $0xc0] sm:$0xff]
  %v39 = vld [vmem:[%s0 + $0xc8] sm:$0xff]
  %v40 = vld [vmem:[%s0 + $0xd0] sm:$0xff]
  %v41 = vld [vmem:[%s0 + $0xd8] sm:$0xff]
  %v42 = vld [vmem:[%s0 + $0xe0] sm:$0xff]
  %v43 = vld [vmem:[%s0 + $0xe8] sm:$0xff]
  %v44 = vld [vmem:[%s0 + $0xf0] sm:$0xff]
  %v45 = vld [vmem:[%s0 + $0xf8] sm:$0xff]
  %v46 = vld [vmem:[%s1] sm:$0xff]
  %v47 = vld [vmem:[%s1 + $0x8] sm:$0xff]
  %v48 = vld [vmem:[%s1 + $0x10] sm:$0xff]
  %v49 = vld [vmem:[%s1 + $0x18] sm:$0xff]
  %v50 = vld [vmem:[%s1 + $0x20] sm:$0xff]
  %v51 = vld [vmem:[%s1 + $0x28] sm:$0xff]
  %v52 = vld [vmem:[%s1 + $0x30] sm:$0xff]
  %v53 = vld [vmem:[%s1 + $0x38] sm:$0xff]
  %v54 = vld [vmem:[%s2] sm:$0x1]
  %v56 = vlaneseq
  %v57 = vshrl.u32 %v56, 7
  %v58 = vsub.s32 0, %v57
  %v59 = vrot.slane %v54, %v58
  %vm61 = vcmask 523264
  %v63 = vsel %vm61, %v14, 0
  %v66 = vsel %vm61, %v15, 0
  %v69 = vsel %vm61, %v16, 0
  %v72 = vsel %vm61, %v17, 0
  %v75 = vsel %vm61, %v18, 0
  %v78 = vsel %vm61, %v19, 0
  %v81 = vsel %vm61, %v20, 0
  %v84 = vsel %vm61, %v21, 0
  %v87 = vsel %vm61, %v22, 0
  %v90 = vsel %vm61, %v23, 0
  %v93 = vsel %vm61, %v24, 0
  %v96 = vsel %vm61, %v25, 0
  %v99 = vsel %vm61, %v26, 0
  %v102 = vsel %vm61, %v27, 0
  %v105 = vsel %vm61, %v28, 0
  %v108 = vsel %vm61, %v29, 0
  %v111 = vsel %vm61, %v30, 0
  %v114 = vsel %vm61, %v31, 0
  %v117 = vsel %vm61, %v32, 0
  %v120 = vsel %vm61, %v33, 0
  %v123 = vsel %vm61, %v34, 0
  %v126 = vsel %vm61, %v35, 0
  %v129 = vsel %vm61, %v36, 0
  %v132 = vsel %vm61, %v37, 0
  %v135 = vsel %vm61, %v38, 0
  %v138 = vsel %vm61, %v39, 0
  %v141 = vsel %vm61, %v40, 0
  %v144 = vsel %vm61, %v41, 0
  %v147 = vsel %vm61, %v42, 0
  %v150 = vsel %vm61, %v43, 0
  %v153 = vsel %vm61, %v44, 0
  %v156 = vsel %vm61, %v45, 0
  %158 = vmatprep.subr.mxu0 0.0
  %159 = vmatpush1.msra.mxu0 0.0
  %160 = vmatprep.subr.mxu0 0.0
  %161 = vmatpush1.msra.mxu0 0.0
  %162 = vmatprep.subr.mxu0 0.0
  %163 = vmatpush1.msra.mxu0 0.0
  %164 = vmatprep.subr.mxu0 0.0
  %165 = vmatpush1.msra.mxu0 0.0
  %166 = vmatprep.subr.mxu0 0.0
  %167 = vmatpush1.msra.mxu0 0.0
  %168 = vmatprep.subr.mxu0 0.0
  %169 = vmatpush1.msra.mxu0 0.0
  %170 = vmatprep.subr.mxu0 0.0
  %171 = vmatpush1.msra.mxu0 0.0
  %172 = vmatprep.subr.mxu0 0.0
  %173 = vmatpush1.msra.mxu0 0.0
  %174 = vmatprep.subr.mxu0 0.0
  %175 = vmatpush1.msra.mxu0 %v53
  %176 = vmatprep.subr.mxu0 0.0
  %177 = vmatpush1.msra.mxu0 %v52
  %178 = vmatprep.subr.mxu0 0.0
  %179 = vmatpush1.msra.mxu0 %v51
  %180 = vmatprep.subr.mxu0 0.0
  %181 = vmatpush1.msra.mxu0 %v50
  %182 = vmatprep.subr.mxu0 0.0
  %183 = vmatpush1.msra.mxu0 %v49
  %184 = vmatprep.subr.mxu0 0.0
  %185 = vmatpush1.msra.mxu0 %v48
  %186 = vmatprep.subr.mxu0 0.0
  %187 = vmatpush1.msra.mxu0 %v47
  %188 = vmatprep.subr.mxu0 0.0
  %189 = vmatpush1.msra.mxu0 %v46
  %190 = vmatprep.subr.mxu0 0.0
  %191 = vmatpush2.msra.mxu0 0.0
  %192 = vmatprep.subr.mxu0 0.0
  %193 = vmatpush2.msra.mxu0 0.0
  %194 = vmatprep.subr.mxu0 0.0
  %195 = vmatpush2.msra.mxu0 0.0
  %196 = vmatprep.subr.mxu0 0.0
  %197 = vmatpush2.msra.mxu0 0.0
  %198 = vmatprep.subr.mxu0 0.0
  %199 = vmatpush2.msra.mxu0 0.0
  %200 = vmatprep.subr.mxu0 0.0
  %201 = vmatpush2.msra.mxu0 0.0
  %202 = vmatprep.subr.mxu0 0.0
  %203 = vmatpush2.msra.mxu0 0.0
  %204 = vmatprep.subr.mxu0 0.0
  %205 = vmatpush2.msra.mxu0 0.0
  %206 = vmatprep.subr.mxu0 0.0
  %207 = vmatpush2.msra.mxu0 0.0
  %208 = vmatprep.subr.mxu0 0.0
  %209 = vmatpush2.msra.mxu0 0.0
  %210 = vmatprep.subr.mxu0 0.0
  %211 = vmatpush2.msra.mxu0 0.0
  %212 = vmatprep.subr.mxu0 0.0
  %213 = vmatpush2.msra.mxu0 0.0
  %214 = vmatprep.subr.mxu0 0.0
  %215 = vmatpush2.msra.mxu0 0.0
  %216 = vmatprep.subr.mxu0 0.0
  %217 = vmatpush2.msra.mxu0 0.0
  %218 = vmatprep.subr.mxu0 0.0
  %219 = vmatpush2.msra.mxu0 0.0
  %220 = vmatprep.subr.mxu0 0.0
  %221 = vmatpush2.msra.mxu0 0.0
  %222 = vmatprep.mubr.f32.mxu0 0.0
  %223 = vmatmul.mubr.f32.gmra.mxu0 %v63
  %v224 = vpop.f32.mrf.mxu0
  %v225 = vadd.f32 %v59, %v224
  %v226 = vpop.f32.mrf.mxu0
  %227 = vmatprep.mubr.f32.mxu0 0.0
  %228 = vmatmul.mubr.f32.gmra.mxu0 %v66
  %v229 = vpop.f32.mrf.mxu0
  %v230 = vadd.f32 %v59, %v229
  %v231 = vpop.f32.mrf.mxu0
  %232 = vmatprep.mubr.f32.mxu0 0.0
  %233 = vmatmul.mubr.f32.gmra.mxu0 %v69
  %v234 = vpop.f32.mrf.mxu0
  %v235 = vadd.f32 %v59, %v234
  %v236 = vpop.f32.mrf.mxu0
  %237 = vmatprep.mubr.f32.mxu0 0.0
  %238 = vmatmul.mubr.f32.gmra.mxu0 %v72
  %v239 = vpop.f32.mrf.mxu0
  %v240 = vadd.f32 %v59, %v239
  %v241 = vpop.f32.mrf.mxu0
  %242 = vmatprep.mubr.f32.mxu0 0.0
  %243 = vmatmul.mubr.f32.gmra.mxu0 %v75
  %v244 = vpop.f32.mrf.mxu0
  %v245 = vadd.f32 %v59, %v244
  %v246 = vpop.f32.mrf.mxu0
  %247 = vmatprep.mubr.f32.mxu0 0.0
  %248 = vmatmul.mubr.f32.gmra.mxu0 %v78
  %v249 = vpop.f32.mrf.mxu0
  %v250 = vadd.f32 %v59, %v249
  %v251 = vpop.f32.mrf.mxu0
  %252 = vmatprep.mubr.f32.mxu0 0.0
  %253 = vmatmul.mubr.f32.gmra.mxu0 %v81
  %v254 = vpop.f32.mrf.mxu0
  %v255 = vadd.f32 %v59, %v254
  %v256 = vpop.f32.mrf.mxu0
  %257 = vmatprep.mubr.f32.mxu0 0.0
  %258 = vmatmul.mubr.f32.gmra.mxu0 %v84
  %v259 = vpop.f32.mrf.mxu0
  %v260 = vadd.f32 %v59, %v259
  %v261 = vpop.f32.mrf.mxu0
  %262 = vmatprep.mubr.f32.mxu0 0.0
  %263 = vmatmul.mubr.f32.gmra.mxu0 %v87
  %v264 = vpop.f32.mrf.mxu0
  %v265 = vadd.f32 %v59, %v264
  %v266 = vpop.f32.mrf.mxu0
  %267 = vmatprep.mubr.f32.mxu0 0.0
  %268 = vmatmul.mubr.f32.gmra.mxu0 %v90
  %v269 = vpop.f32.mrf.mxu0
  %v270 = vadd.f32 %v59, %v269
  %v271 = vpop.f32.mrf.mxu0
  %272 = vmatprep.mubr.f32.mxu0 0.0
  %273 = vmatmul.mubr.f32.gmra.mxu0 %v93
  %v274 = vpop.f32.mrf.mxu0
  %v275 = vadd.f32 %v59, %v274
  %v276 = vpop.f32.mrf.mxu0
  %277 = vmatprep.mubr.f32.mxu0 0.0
  %278 = vmatmul.mubr.f32.gmra.mxu0 %v96
  %v279 = vpop.f32.mrf.mxu0
  %v280 = vadd.f32 %v59, %v279
  %v281 = vpop.f32.mrf.mxu0
  %282 = vmatprep.mubr.f32.mxu0 0.0
  %283 = vmatmul.mubr.f32.gmra.mxu0 %v99
  %v284 = vpop.f32.mrf.mxu0
  %v285 = vadd.f32 %v59, %v284
  %v286 = vpop.f32.mrf.mxu0
  %287 = vmatprep.mubr.f32.mxu0 0.0
  %288 = vmatmul.mubr.f32.gmra.mxu0 %v102
  %v289 = vpop.f32.mrf.mxu0
  %v290 = vadd.f32 %v59, %v289
  %v291 = vpop.f32.mrf.mxu0
  %292 = vmatprep.mubr.f32.mxu0 0.0
  %293 = vmatmul.mubr.f32.gmra.mxu0 %v105
  %v294 = vpop.f32.mrf.mxu0
  %v295 = vadd.f32 %v59, %v294
  %v296 = vpop.f32.mrf.mxu0
  %297 = vmatprep.mubr.f32.mxu0 0.0
  %298 = vmatmul.mubr.f32.gmra.mxu0 %v108
  %v299 = vpop.f32.mrf.mxu0
  %v300 = vadd.f32 %v59, %v299
  %v301 = vpop.f32.mrf.mxu0
  %302 = vmatprep.mubr.f32.mxu0 0.0
  %303 = vmatmul.mubr.f32.gmra.mxu0 %v111
  %v304 = vpop.f32.mrf.mxu0
  %v305 = vadd.f32 %v59, %v304
  %v306 = vpop.f32.mrf.mxu0
  %307 = vmatprep.mubr.f32.mxu0 0.0
  %308 = vmatmul.mubr.f32.gmra.mxu0 %v114
  %v309 = vpop.f32.mrf.mxu0
  %v310 = vadd.f32 %v59, %v309
  %v311 = vpop.f32.mrf.mxu0
  %312 = vmatprep.mubr.f32.mxu0 0.0
  %313 = vmatmul.mubr.f32.gmra.mxu0 %v117
  %v314 = vpop.f32.mrf.mxu0
  %v315 = vadd.f32 %v59, %v314
  %v316 = vpop.f32.mrf.mxu0
  %317 = vmatprep.mubr.f32.mxu0 0.0
  %318 = vmatmul.mubr.f32.gmra.mxu0 %v120
  %v319 = vpop.f32.mrf.mxu0
  %v320 = vadd.f32 %v59, %v319
  %v321 = vpop.f32.mrf.mxu0
  %322 = vmatprep.mubr.f32.mxu0 0.0
  %323 = vmatmul.mubr.f32.gmra.mxu0 %v123
  %v324 = vpop.f32.mrf.mxu0
  %v325 = vadd.f32 %v59, %v324
  %v326 = vpop.f32.mrf.mxu0
  %327 = vmatprep.mubr.f32.mxu0 0.0
  %328 = vmatmul.mubr.f32.gmra.mxu0 %v126
  %v329 = vpop.f32.mrf.mxu0
  %v330 = vadd.f32 %v59, %v329
  %v331 = vpop.f32.mrf.mxu0
  %332 = vmatprep.mubr.f32.mxu0 0.0
  %333 = vmatmul.mubr.f32.gmra.mxu0 %v129
  %v334 = vpop.f32.mrf.mxu0
  %v335 = vadd.f32 %v59, %v334
  %v336 = vpop.f32.mrf.mxu0
  %337 = vmatprep.mubr.f32.mxu0 0.0
  %338 = vmatmul.mubr.f32.gmra.mxu0 %v132
  %v339 = vpop.f32.mrf.mxu0
  %v340 = vadd.f32 %v59, %v339
  %v341 = vpop.f32.mrf.mxu0
  %342 = vmatprep.mubr.f32.mxu0 0.0
  %343 = vmatmul.mubr.f32.gmra.mxu0 %v135
  %v344 = vpop.f32.mrf.mxu0
  %v345 = vadd.f32 %v59, %v344
  %v346 = vpop.f32.mrf.mxu0
  %347 = vmatprep.mubr.f32.mxu0 0.0
  %348 = vmatmul.mubr.f32.gmra.mxu0 %v138
  %v349 = vpop.f32.mrf.mxu0
  %v350 = vadd.f32 %v59, %v349
  %v351 = vpop.f32.mrf.mxu0
  %352 = vmatprep.mubr.f32.mxu0 0.0
  %353 = vmatmul.mubr.f32.gmra.mxu0 %v141
  %v354 = vpop.f32.mrf.mxu0
  %v355 = vadd.f32 %v59, %v354
  %v356 = vpop.f32.mrf.mxu0
  %357 = vmatprep.mubr.f32.mxu0 0.0
  %358 = vmatmul.mubr.f32.gmra.mxu0 %v144
  %v359 = vpop.f32.mrf.mxu0
  %v360 = vadd.f32 %v59, %v359
  %v361 = vpop.f32.mrf.mxu0
  %362 = vmatprep.mubr.f32.mxu0 0.0
  %363 = vmatmul.mubr.f32.gmra.mxu0 %v147
  %v364 = vpop.f32.mrf.mxu0
  %v365 = vadd.f32 %v59, %v364
  %v366 = vpop.f32.mrf.mxu0
  %367 = vmatprep.mubr.f32.mxu0 0.0
  %368 = vmatmul.mubr.f32.gmra.mxu0 %v150
  %v369 = vpop.f32.mrf.mxu0
  %v370 = vadd.f32 %v59, %v369
  %v371 = vpop.f32.mrf.mxu0
  %372 = vmatprep.mubr.f32.mxu0 0.0
  %373 = vmatmul.mubr.f32.gmra.mxu0 %v153
  %v374 = vpop.f32.mrf.mxu0
  %v375 = vadd.f32 %v59, %v374
  %v376 = vpop.f32.mrf.mxu0
  %377 = vmatprep.mubr.f32.mxu0 0.0
  %378 = vmatmul.mubr.f32.gmra.mxu0 %v156
  %v379 = vpop.f32.mrf.mxu0
  %v380 = vadd.f32 %v59, %v379
  %v381 = vpop.f32.mrf.mxu0
  %382 = vdwg.mxu0
  %vm383 = vcmask 64512
  %384 = vst.msk [vmem:[%s3] sm:$0xff] %vm383, %v225
  %385 = vst.msk [vmem:[%s3 + $0x8] sm:$0xff] %vm383, %v230
  %386 = vst.msk [vmem:[%s3 + $0x10] sm:$0xff] %vm383, %v235
  %387 = vst.msk [vmem:[%s3 + $0x18] sm:$0xff] %vm383, %v240
  %388 = vst.msk [vmem:[%s3 + $0x20] sm:$0xff] %vm383, %v245
  %389 = vst.msk [vmem:[%s3 + $0x28] sm:$0xff] %vm383, %v250
  %390 = vst.msk [vmem:[%s3 + $0x30] sm:$0xff] %vm383, %v255
  %391 = vst.msk [vmem:[%s3 + $0x38] sm:$0xff] %vm383, %v260
  %392 = vst.msk [vmem:[%s3 + $0x40] sm:$0xff] %vm383, %v265
  %393 = vst.msk [vmem:[%s3 + $0x48] sm:$0xff] %vm383, %v270
  %394 = vst.msk [vmem:[%s3 + $0x50] sm:$0xff] %vm383, %v275
  %395 = vst.msk [vmem:[%s3 + $0x58] sm:$0xff] %vm383, %v280
  %396 = vst.msk [vmem:[%s3 + $0x60] sm:$0xff] %vm383, %v285
  %397 = vst.msk [vmem:[%s3 + $0x68] sm:$0xff] %vm383, %v290
  %398 = vst.msk [vmem:[%s3 + $0x70] sm:$0xff] %vm383, %v295
  %399 = vst.msk [vmem:[%s3 + $0x78] sm:$0xff] %vm383, %v300
  %400 = vst.msk [vmem:[%s3 + $0x80] sm:$0xff] %vm383, %v305
  %401 = vst.msk [vmem:[%s3 + $0x88] sm:$0xff] %vm383, %v310
  %402 = vst.msk [vmem:[%s3 + $0x90] sm:$0xff] %vm383, %v315
  %403 = vst.msk [vmem:[%s3 + $0x98] sm:$0xff] %vm383, %v320
  %404 = vst.msk [vmem:[%s3 + $0xa0] sm:$0xff] %vm383, %v325
  %405 = vst.msk [vmem:[%s3 + $0xa8] sm:$0xff] %vm383, %v330
  %406 = vst.msk [vmem:[%s3 + $0xb0] sm:$0xff] %vm383, %v335
  %407 = vst.msk [vmem:[%s3 + $0xb8] sm:$0xff] %vm383, %v340
  %408 = vst.msk [vmem:[%s3 + $0xc0] sm:$0xff] %vm383, %v345
  %409 = vst.msk [vmem:[%s3 + $0xc8] sm:$0xff] %vm383, %v350
  %410 = vst.msk [vmem:[%s3 + $0xd0] sm:$0xff] %vm383, %v355
  %411 = vst.msk [vmem:[%s3 + $0xd8] sm:$0xff] %vm383, %v360
  %412 = vst.msk [vmem:[%s3 + $0xe0] sm:$0xff] %vm383, %v365
  %413 = vst.msk [vmem:[%s3 + $0xe8] sm:$0xff] %vm383, %v370
  %414 = vst.msk [vmem:[%s3 + $0xf0] sm:$0xff] %vm383, %v375
  %415 = vst.msk [vmem:[%s3 + $0xf8] sm:$0xff] %vm383, %v380
  // Predicated region
  $region14: #{tpu_custom_call.1} parent=0 // pred_check
    _
  $region15: #{tpu_custom_call.1} parent=0 // pred_check_branch
    %417 = sbr.rel (0) target = $region17
  $region16: #{tpu_custom_call.1} parent=0 // pred_region
    _
  $region17: #{tpu_custom_call.1} parent=0 // pred_fallthru
    _
  // Predicated region
  $region18: #{tpu_custom_call.1} parent=0 // pred_check
    _
  $region19: #{tpu_custom_call.1} parent=0 // pred_check_branch
    %419 = sbr.rel (0) target = $region21
  $region20: #{tpu_custom_call.1} parent=0 // pred_region
    _
  $region21: #{tpu_custom_call.1} parent=0 // pred_fallthru
    _

</llo_original>
